<compile_context>
chip_gen: v7x
topology: tpu7x:2x2x1
jax: 0.10.0
libtpu: 0.0.40
codegen_flags: <defaults>
</compile_context>

<pallas_src>
import functools

import jax
import jax.numpy as jnp
from jax.experimental import pallas as pl
from jax.experimental.pallas import tpu as pltpu

# ---------------- problem sizes (small, consistent with the module) ----------------
B = 8                    # batch
EMB = 4                  # embedding_dim
N_DENSE = 3              # num_dense_feats
N_SPARSE = 5             # num_sparse_feats
BLOCK_IN = 16            # block_in_dim
BLOCK_OUT = 16           # block_out_dim
HIDDEN = 32              # hidden_size
NUM_INPUTS = 2           # dense branch + sparse branch
DROPOUT_P = 0.5
BN_EPS = 1e-5

D_DENSE = N_DENSE * EMB            # raw_dense_linear in-features  (12)
D_SPARSE = N_SPARSE * EMB          # raw_sparse_linear in-features (20)
D_IN = D_DENSE + D_SPARSE          # concatenated raw-input width  (32)
D_CAT = BLOCK_OUT * NUM_INPUTS     # hidden_linear in-features     (32)


def _mlp_kernel(x_ref, w_ref, b_ref, gamma_ref, beta_ref, mask_ref,
                out_ref, sum_ref, ssq_ref, *, batch):
    """Two-pass fused MLP tail.

    Grid = (2, num_batch_tiles).  Pass 0 accumulates BatchNorm statistics over the
    full batch; pass 1 normalizes, applies ReLU + dropout and writes the output.
    The (tiny) folded matmul is recomputed in both passes, which keeps VMEM usage
    independent of the total batch size.
    """
    p = pl.program_id(0)   # 0 = stats pass, 1 = write pass
    t = pl.program_id(1)   # batch-tile index

    # Entire affine chain (raw linears -> concat -> hidden -> output), pre-folded
    # into a single (D_IN, BLOCK_OUT) weight and (1, BLOCK_OUT) bias.
    y = jnp.dot(x_ref[...], w_ref[...],
                preferred_element_type=jnp.float32) + b_ref[...]

    @pl.when(jnp.logical_and(p == 0, t == 0))
    def _init():
        sum_ref[...] = jnp.zeros_like(sum_ref)
        ssq_ref[...] = jnp.zeros_like(ssq_ref)

    @pl.when(p == 0)
    def _accumulate():
        sum_ref[...] += jnp.sum(y, axis=0, keepdims=True)
        ssq_ref[...] += jnp.sum(y * y, axis=0, keepdims=True)

    @pl.when(p == 1)
    def _finalize():
        inv_b = jnp.float32(1.0 / batch)
        mean = sum_ref[...] * inv_b
        var = ssq_ref[...] * inv_b - mean * mean          # biased batch variance
        scale = gamma_ref[...] * jax.lax.rsqrt(var + BN_EPS)
        shift = beta_ref[...] - mean * scale
        o = jnp.maximum(y * scale + shift, 0.0)           # BatchNorm1d + ReLU
        o = o * mask_ref[...]                             # inverted dropout (mask pre-scaled)
        out_ref[...] = o.astype(out_ref.dtype)


def fold_params(params):
    """One-time fold of the four linear layers into a single effective affine."""
    blockdiag = jnp.zeros((D_IN, D_CAT), jnp.float32)
    blockdiag = blockdiag.at[:D_DENSE, :BLOCK_OUT].set(params["wd"])
    blockdiag = blockdiag.at[D_DENSE:, BLOCK_OUT:].set(params["ws"])
    w_eff = blockdiag @ params["wh"] @ params["wo"]                        # (D_IN, BLOCK_OUT)
    b_cat = jnp.concatenate([params["bd"], params["bs"]], axis=1)          # (1, D_CAT)
    b_eff = (b_cat @ params["wh"] + params["bh"]) @ params["wo"] + params["bo"]
    return dict(w_eff=w_eff, b_eff=b_eff,
                gamma=params["gamma"], beta=params["beta"])


def mlp_forward(x_dense, x_sparse, folded, dropout_key, *, dropout_rate=DROPOUT_P):
    """x_dense: (B, N_DENSE, EMB); x_sparse: (B, N_SPARSE, EMB). Returns (B, BLOCK_OUT)."""
    b = x_dense.shape[0]
    xd = x_dense.reshape(b, -1).astype(jnp.float32)
    xs = x_sparse.reshape(b, -1).astype(jnp.float32)
    x_cat = jnp.concatenate([xd, xs], axis=1)                              # (B, D_IN)

    # Training-mode inverted-dropout keep mask, pre-scaled by 1/(1-p).
    keep = jax.random.bernoulli(dropout_key, 1.0 - dropout_rate, (b, BLOCK_OUT))
    mask = keep.astype(jnp.float32) * (1.0 / (1.0 - dropout_rate))

    # Batch tiling: 512-row tiles when the batch divides evenly, otherwise one tile.
    tb = 512 if (b % 512 == 0) else b
    nt = b // tb

    kernel = functools.partial(_mlp_kernel, batch=b)

    return pl.pallas_call(
        kernel,
        out_shape=jax.ShapeDtypeStruct((b, BLOCK_OUT), jnp.float32),
        grid=(2, nt),                                   # (pass, batch tile)
        in_specs=[
            pl.BlockSpec((tb, D_IN), lambda p, t: (t, 0)),            # activations (streamed)
            pl.BlockSpec((D_IN, BLOCK_OUT), lambda p, t: (0, 0)),     # folded weight (resident)
            pl.BlockSpec((1, BLOCK_OUT), lambda p, t: (0, 0)),        # folded bias (resident)
            pl.BlockSpec((1, BLOCK_OUT), lambda p, t: (0, 0)),        # BN gamma (resident)
            pl.BlockSpec((1, BLOCK_OUT), lambda p, t: (0, 0)),        # BN beta (resident)
            pl.BlockSpec((tb, BLOCK_OUT), lambda p, t: (p * t, 0)),   # dropout mask (pass 1 only)
        ],
        out_specs=pl.BlockSpec((tb, BLOCK_OUT), lambda p, t: (p * t, 0)),
        scratch_shapes=[
            pltpu.VMEM((1, BLOCK_OUT), jnp.float32),   # running sum   (BN)
            pltpu.VMEM((1, BLOCK_OUT), jnp.float32),   # running sumsq (BN)
        ],
        compiler_params=pltpu.CompilerParams(
            # Full-batch BN statistics couple all tiles -> both axes sequential.
            dimension_semantics=("arbitrary", "arbitrary")),
    )(x_cat, folded["w_eff"], folded["b_eff"], folded["gamma"], folded["beta"], mask)


def init_params(key):
    """Deterministic parameter init (nn.Linear-style uniform(+-1/sqrt(fan_in)))."""
    def linear(k, fan_in, fan_out):
        kw, kb = jax.random.split(k)
        lim = 1.0 / jnp.sqrt(jnp.float32(fan_in))
        w = jax.random.uniform(kw, (fan_in, fan_out), jnp.float32, -lim, lim)
        b = jax.random.uniform(kb, (1, fan_out), jnp.float32, -lim, lim)
        return w, b

    k1, k2, k3, k4 = jax.random.split(key, 4)
    wd, bd = linear(k1, D_DENSE, BLOCK_OUT)    # _raw_dense_linear
    ws, bs = linear(k2, D_SPARSE, BLOCK_OUT)   # _raw_sparse_linear
    wh, bh = linear(k3, D_CAT, HIDDEN)         # _hidden_linear
    wo, bo = linear(k4, HIDDEN, BLOCK_OUT)     # _output_linear
    return dict(
        wd=wd, bd=bd, ws=ws, bs=bs, wh=wh, bh=bh, wo=wo, bo=bo,
        gamma=jnp.ones((1, BLOCK_OUT), jnp.float32),   # BatchNorm1d weight
        beta=jnp.zeros((1, BLOCK_OUT), jnp.float32),   # BatchNorm1d bias
    )


def reference_forward(x_dense, x_sparse, params, dropout_key, *, dropout_rate=DROPOUT_P):
    """Unfused pure-JAX reference mirroring the torch forward (same dropout mask)."""
    b = x_dense.shape[0]
    xd = x_dense.reshape(b, -1)
    xs = x_sparse.reshape(b, -1)
    h_d = xd @ params["wd"] + params["bd"]
    h_s = xs @ params["ws"] + params["bs"]
    x = jnp.concatenate([h_d, h_s], axis=1)
    final = x @ params["wh"] + params["bh"]
    out = final @ params["wo"] + params["bo"]
    mean = out.mean(axis=0, keepdims=True)
    var = ((out - mean) ** 2).mean(axis=0, keepdims=True)    # biased variance
    out = (out - mean) / jnp.sqrt(var + BN_EPS) * params["gamma"] + params["beta"]
    out = jnp.maximum(out, 0.0)
    keep = jax.random.bernoulli(dropout_key, 1.0 - dropout_rate, (b, BLOCK_OUT))
    return out * keep.astype(jnp.float32) * (1.0 / (1.0 - dropout_rate))


if __name__ == "__main__":
    root = jax.random.PRNGKey(0)
    kp, kd, ks, kdrop = jax.random.split(root, 4)

    params = init_params(kp)
    folded = fold_params(params)

    x_dense = jax.random.normal(kd, (B, N_DENSE, EMB), jnp.float32)
    x_sparse = jax.random.normal(ks, (B, N_SPARSE, EMB), jnp.float32)

    out = mlp_forward(x_dense, x_sparse, folded, kdrop)
    out = jax.block_until_ready(out)

    assert out.shape == (B, BLOCK_OUT), out.shape
    assert out.dtype == jnp.float32
    assert bool(jnp.all(jnp.isfinite(out)))
    assert bool(jnp.all(out >= 0.0))  # post-ReLU / non-negative dropout scaling

    ref = reference_forward(x_dense, x_sparse, params, kdrop)
    assert bool(jnp.allclose(out, ref, atol=5e-3, rtol=5e-3)), (
        float(jnp.max(jnp.abs(out - ref))))

    print("KERNEL_OK")
</pallas_src>

<mosaic_0001>
module attributes {stable_mosaic.version = 11 : i64} {
  func.func @_mlp_kernel(%arg0: i32, %arg1: i32, %arg2: memref<8x32xf32, #tpu.memory_space<vmem>>, %arg3: memref<32x16xf32, #tpu.memory_space<vmem>>, %arg4: memref<1x16xf32, #tpu.memory_space<vmem>>, %arg5: memref<1x16xf32, #tpu.memory_space<vmem>>, %arg6: memref<1x16xf32, #tpu.memory_space<vmem>>, %arg7: memref<8x16xf32, #tpu.memory_space<vmem>>, %arg8: memref<8x16xf32, #tpu.memory_space<vmem>>, %arg9: memref<1x16xf32, #tpu.memory_space<vmem>>, %arg10: memref<1x16xf32, #tpu.memory_space<vmem>>) attributes {dimension_semantics = [#tpu.dimension_semantics<arbitrary>, #tpu.dimension_semantics<arbitrary>], iteration_bounds = array<i64: 2, 1>, scalar_prefetch = 0 : i64, scratch_operands = 2 : i64, tpu.core_type = #tpu.core_type<tc>, window_params = [{transform_indices = @transform_0, window_bounds = array<i64: 8, 32>}, {pipeline_mode = #tpu.pipeline_mode<synchronous>, transform_indices = @transform_1, window_bounds = array<i64: 32, 16>}, {pipeline_mode = #tpu.pipeline_mode<synchronous>, transform_indices = @transform_2, window_bounds = array<i64: 1, 16>}, {pipeline_mode = #tpu.pipeline_mode<synchronous>, transform_indices = @transform_3, window_bounds = array<i64: 1, 16>}, {pipeline_mode = #tpu.pipeline_mode<synchronous>, transform_indices = @transform_4, window_bounds = array<i64: 1, 16>}, {transform_indices = @transform_5, window_bounds = array<i64: 8, 16>}, {transform_indices = @transform_6, window_bounds = array<i64: 8, 16>}]} {
    %c0 = arith.constant 0 : index
    %c0_0 = arith.constant 0 : index
    %0 = vector.load %arg2[%c0, %c0_0] : memref<8x32xf32, #tpu.memory_space<vmem>>, vector<8x32xf32>
    %c0_1 = arith.constant 0 : index
    %c0_2 = arith.constant 0 : index
    %1 = vector.load %arg3[%c0_1, %c0_2] : memref<32x16xf32, #tpu.memory_space<vmem>>, vector<32x16xf32>
    %cst = arith.constant dense<0.000000e+00> : vector<8x16xf32>
    %2 = tpu.matmul %0, %1, %cst {dimension_numbers = #tpu.dot_dimension_numbers<[1], [0], [0], [1], [0, 0, 1, 1], [], []>} : vector<8x32xf32>, vector<32x16xf32>, vector<8x16xf32> -> vector<8x16xf32>
    %c0_3 = arith.constant 0 : index
    %c0_4 = arith.constant 0 : index
    %3 = vector.load %arg4[%c0_3, %c0_4] : memref<1x16xf32, #tpu.memory_space<vmem>>, vector<1x16xf32>
    %4 = vector.broadcast %3 : vector<1x16xf32> to vector<8x16xf32>
    %5 = arith.addf %2, %4 : vector<8x16xf32>
    %c0_i32 = arith.constant 0 : i32
    %6 = arith.cmpi eq, %arg0, %c0_i32 : i32
    %c0_i32_5 = arith.constant 0 : i32
    %7 = arith.cmpi eq, %arg1, %c0_i32_5 : i32
    %8 = arith.andi %6, %7 : i1
    %9 = arith.extui %8 : i1 to i32
    %c0_i32_6 = arith.constant 0 : i32
    %10 = arith.cmpi ne, %9, %c0_i32_6 : i32
    scf.if %10 {
      %cst_10 = arith.constant 0.000000e+00 : f32
      %17 = vector.broadcast %cst_10 : f32 to vector<1x16xf32>
      %c0_11 = arith.constant 0 : index
      %c0_12 = arith.constant 0 : index
      %18 = vector.load %arg9[%c0_11, %c0_12] : memref<1x16xf32, #tpu.memory_space<vmem>>, vector<1x16xf32>
      tpu.vector_store %arg9[%c0_11, %c0_12], %17 {strides = array<i32>} : memref<1x16xf32, #tpu.memory_space<vmem>>, vector<1x16xf32>,
      %cst_13 = arith.constant 0.000000e+00 : f32
      %19 = vector.broadcast %cst_13 : f32 to vector<1x16xf32>
      %c0_14 = arith.constant 0 : index
      %c0_15 = arith.constant 0 : index
      %20 = vector.load %arg10[%c0_14, %c0_15] : memref<1x16xf32, #tpu.memory_space<vmem>>, vector<1x16xf32>
      tpu.vector_store %arg10[%c0_14, %c0_15], %19 {strides = array<i32>} : memref<1x16xf32, #tpu.memory_space<vmem>>, vector<1x16xf32>,
    } else {
    }
    %c0_i32_7 = arith.constant 0 : i32
    %11 = arith.cmpi eq, %arg0, %c0_i32_7 : i32
    %12 = arith.extui %11 : i1 to i32
    %c0_i32_8 = arith.constant 0 : i32
    %13 = arith.cmpi ne, %12, %c0_i32_8 : i32
    scf.if %13 {
      %c0_10 = arith.constant 0 : index
      %c0_11 = arith.constant 0 : index
      %17 = vector.load %arg9[%c0_10, %c0_11] : memref<1x16xf32, #tpu.memory_space<vmem>>, vector<1x16xf32>
      %cst_12 = arith.constant dense<0.000000e+00> : vector<16xf32>
      %18 = vector.multi_reduction <add>, %5, %cst_12 [0] : vector<8x16xf32> to vector<16xf32>
      %19 = vector.shape_cast %18 : vector<16xf32> to vector<1x16xf32>
      %20 = arith.addf %17, %19 : vector<1x16xf32>
      %c0_13 = arith.constant 0 : index
      %c0_14 = arith.constant 0 : index
      %21 = vector.load %arg9[%c0_13, %c0_14] : memref<1x16xf32, #tpu.memory_space<vmem>>, vector<1x16xf32>
      tpu.vector_store %arg9[%c0_13, %c0_14], %20 {strides = array<i32>} : memref<1x16xf32, #tpu.memory_space<vmem>>, vector<1x16xf32>,
      %c0_15 = arith.constant 0 : index
      %c0_16 = arith.constant 0 : index
      %22 = vector.load %arg10[%c0_15, %c0_16] : memref<1x16xf32, #tpu.memory_space<vmem>>, vector<1x16xf32>
      %23 = arith.mulf %5, %5 : vector<8x16xf32>
      %cst_17 = arith.constant dense<0.000000e+00> : vector<16xf32>
      %24 = vector.multi_reduction <add>, %23, %cst_17 [0] : vector<8x16xf32> to vector<16xf32>
      %25 = vector.shape_cast %24 : vector<16xf32> to vector<1x16xf32>
      %26 = arith.addf %22, %25 : vector<1x16xf32>
      %c0_18 = arith.constant 0 : index
      %c0_19 = arith.constant 0 : index
      %27 = vector.load %arg10[%c0_18, %c0_19] : memref<1x16xf32, #tpu.memory_space<vmem>>, vector<1x16xf32>
      tpu.vector_store %arg10[%c0_18, %c0_19], %26 {strides = array<i32>} : memref<1x16xf32, #tpu.memory_space<vmem>>, vector<1x16xf32>,
    } else {
    }
    %c1_i32 = arith.constant 1 : i32
    %14 = arith.cmpi eq, %arg0, %c1_i32 : i32
    %15 = arith.extui %14 : i1 to i32
    %c0_i32_9 = arith.constant 0 : i32
    %16 = arith.cmpi ne, %15, %c0_i32_9 : i32
    scf.if %16 {
      %c0_10 = arith.constant 0 : index
      %c0_11 = arith.constant 0 : index
      %17 = vector.load %arg9[%c0_10, %c0_11] : memref<1x16xf32, #tpu.memory_space<vmem>>, vector<1x16xf32>
      %cst_12 = arith.constant 1.250000e-01 : f32
      %18 = vector.broadcast %cst_12 : f32 to vector<1x16xf32>
      %19 = arith.mulf %17, %18 : vector<1x16xf32>
      %c0_13 = arith.constant 0 : index
      %c0_14 = arith.constant 0 : index
      %20 = vector.load %arg10[%c0_13, %c0_14] : memref<1x16xf32, #tpu.memory_space<vmem>>, vector<1x16xf32>
      %cst_15 = arith.constant 1.250000e-01 : f32
      %21 = vector.broadcast %cst_15 : f32 to vector<1x16xf32>
      %22 = arith.mulf %20, %21 : vector<1x16xf32>
      %23 = arith.mulf %19, %19 : vector<1x16xf32>
      %24 = arith.subf %22, %23 : vector<1x16xf32>
      %c0_16 = arith.constant 0 : index
      %c0_17 = arith.constant 0 : index
      %25 = vector.load %arg5[%c0_16, %c0_17] : memref<1x16xf32, #tpu.memory_space<vmem>>, vector<1x16xf32>
      %cst_18 = arith.constant 9.99999974E-6 : f32
      %26 = vector.broadcast %cst_18 : f32 to vector<1x16xf32>
      %27 = arith.addf %24, %26 : vector<1x16xf32>
      %28 = math.rsqrt %27 : vector<1x16xf32>
      %29 = arith.mulf %25, %28 : vector<1x16xf32>
      %c0_19 = arith.constant 0 : index
      %c0_20 = arith.constant 0 : index
      %30 = vector.load %arg6[%c0_19, %c0_20] : memref<1x16xf32, #tpu.memory_space<vmem>>, vector<1x16xf32>
      %31 = arith.mulf %19, %29 : vector<1x16xf32>
      %32 = arith.subf %30, %31 : vector<1x16xf32>
      %33 = vector.broadcast %29 : vector<1x16xf32> to vector<8x16xf32>
      %34 = arith.mulf %5, %33 : vector<8x16xf32>
      %35 = vector.broadcast %32 : vector<1x16xf32> to vector<8x16xf32>
      %36 = arith.addf %34, %35 : vector<8x16xf32>
      %cst_21 = arith.constant 0.000000e+00 : f32
      %37 = vector.broadcast %cst_21 : f32 to vector<8x16xf32>
      %38 = arith.maximumf %36, %37 : vector<8x16xf32>
      %c0_22 = arith.constant 0 : index
      %c0_23 = arith.constant 0 : index
      %39 = vector.load %arg7[%c0_22, %c0_23] : memref<8x16xf32, #tpu.memory_space<vmem>>, vector<8x16xf32>
      %40 = arith.mulf %38, %39 : vector<8x16xf32>
      %c0_24 = arith.constant 0 : index
      %c0_25 = arith.constant 0 : index
      %41 = vector.load %arg8[%c0_24, %c0_25] : memref<8x16xf32, #tpu.memory_space<vmem>>, vector<8x16xf32>
      tpu.vector_store %arg8[%c0_24, %c0_25], %40 {strides = array<i32>} : memref<8x16xf32, #tpu.memory_space<vmem>>, vector<8x16xf32>,
    } else {
    }
    return
  }
  func.func @transform_0(%arg0: i32, %arg1: i32) -> (i32, i32) {
    %c0_i32 = arith.constant 0 : i32
    %c0_i32_0 = arith.constant 0 : i32
    return %arg1, %c0_i32 : i32, i32
  }
  func.func @transform_1(%arg0: i32, %arg1: i32) -> (i32, i32) {
    %c0_i32 = arith.constant 0 : i32
    %c0_i32_0 = arith.constant 0 : i32
    %c0_i32_1 = arith.constant 0 : i32
    return %c0_i32, %c0_i32_0 : i32, i32
  }
  func.func @transform_2(%arg0: i32, %arg1: i32) -> (i32, i32) {
    %c0_i32 = arith.constant 0 : i32
    %c0_i32_0 = arith.constant 0 : i32
    %c0_i32_1 = arith.constant 0 : i32
    return %c0_i32, %c0_i32_0 : i32, i32
  }
  func.func @transform_3(%arg0: i32, %arg1: i32) -> (i32, i32) {
    %c0_i32 = arith.constant 0 : i32
    %c0_i32_0 = arith.constant 0 : i32
    %c0_i32_1 = arith.constant 0 : i32
    return %c0_i32, %c0_i32_0 : i32, i32
  }
  func.func @transform_4(%arg0: i32, %arg1: i32) -> (i32, i32) {
    %c0_i32 = arith.constant 0 : i32
    %c0_i32_0 = arith.constant 0 : i32
    %c0_i32_1 = arith.constant 0 : i32
    return %c0_i32, %c0_i32_0 : i32, i32
  }
  func.func @transform_5(%arg0: i32, %arg1: i32) -> (i32, i32) {
    %0 = arith.muli %arg0, %arg1 : i32
    %c0_i32 = arith.constant 0 : i32
    %c0_i32_0 = arith.constant 0 : i32
    return %0, %c0_i32 : i32, i32
  }
  func.func @transform_6(%arg0: i32, %arg1: i32) -> (i32, i32) {
    %0 = arith.muli %arg0, %arg1 : i32
    %c0_i32 = arith.constant 0 : i32
    %c0_i32_0 = arith.constant 0 : i32
    return %0, %c0_i32 : i32, i32
  }
}

</mosaic_0001>

<llo_original>
// kernel: tpu_custom_call.1
$region0: #{tpu_custom_call.1}
  #allocation0 [shape = 'u32[]', space=smem, size = 0x4, offset = 0x4, fixed_abs, tag = 'smem constant byte address 0x4 - core index']
  #allocation1 [shape = 'u32[144,128]{1,0:T(1,128)}', space=vmem, size = 0x12000, scoped, tag = 'internal scratch']
  #allocation2 [shape = 'f32[1,16]{1,0:T(1,128)}', space=vmem, size = 0x200, scoped, tag = 'scratch operand']
  #allocation3 [shape = 'f32[1,16]{1,0:T(1,128)}', space=vmem, size = 0x200, scoped, tag = 'scratch operand']
  %s0 = inlined_call_operand.vmem [shape: f32[8,32], index: 0, kind: input, shape index: {}]
  %s1 = inlined_call_operand.vmem [shape: f32[32,16], index: 1, kind: input, shape index: {}]
  %s2 = inlined_call_operand.vmem [shape: f32[1,16], index: 2, kind: input, shape index: {}]
  %s3 = inlined_call_operand.vmem [shape: f32[1,16], index: 3, kind: input, shape index: {}]
  %s4 = inlined_call_operand.vmem [shape: f32[1,16], index: 4, kind: input, shape index: {}]
  %s5 = inlined_call_operand.vmem [shape: f32[8,16], index: 5, kind: input, shape index: {}]
  %s6 = inlined_call_operand.hbm [shape: f32[8,16], index: 6, kind: output, shape index: {}]
  %s7 = sld [smem:[#allocation0]]
  $region69: #{tpu_custom_call.1} parent=0
    _
  %s9 = ssub.s32 1, %s7
  %s10 = scalar_select 0, %s9, %s7
  $region1: #{tpu_custom_call.1} parent=0
    #allocation4 [shape = 'u8[8192]{0}', space=vmem, size = 0x2000, scoped, tag = 'output window, operand 0']
    #allocation5 [shape = 's32[2]{0}', space=sflag, size = 0x8, scoped, tag = 'scoped memory for tpu_custom_call.1']
    %11 = vsyncpa [#allocation5], 0
    %s12 = scalar_lea.sflag [#allocation5], 1
    %13 = vsyncpa %s12, 0
    loop: start=0, step=1, limit=4
    $region2: #{tpu_custom_call.1} parent=1 // loop_pre_header
      _
    $region3: #{tpu_custom_call.1} parent=1 // loop_header
      %s15 = sphi 0, %s19
      %p16 = scmp.ge.s32.totalorder %s15, 4
      %s22 = sphi 0, %s34
      %s23 = sphi 0, %s30
      %s24 = sphi 0, %s22
      %s25 = sphi 0, %s23
      %s26 = sphi 0, %s24
      %s27 = sphi 0, %s25
      %s37 = sphi 0, %s39
      %s40 = sphi 0, %s37
      %s41 = sphi 0, %s40
      %s57 = sphi 0, %s41
      %s61 = sphi 0, %s61
      %s63 = sphi 0, %s61
      %s64 = sphi 0, %s63
      %s78 = sphi 0, %s64
      %s82 = sphi 0, %s82
      %s84 = sphi 0, %s82
      %s85 = sphi 0, %s84
      %s99 = sphi 0, %s85
      %s103 = sphi 0, %s103
      %s105 = sphi 0, %s103
      %s106 = sphi 0, %s105
      %s120 = sphi 0, %s106
      %s124 = sphi 0, %s124
      %s126 = sphi 0, %s124
      %s127 = sphi 0, %s126
      %s141 = sphi 0, %s127
      %s149 = sphi 0, %s151
      %s152 = sphi 0, %s149
      %s153 = sphi 0, %s152
      %s169 = sphi 0, %s153
      %s177 = sphi 0, %s179
      %s180 = sphi 0, %s177
      %s181 = sphi 0, %s180
      %s197 = sphi 0, %s181
    $region4: #{tpu_custom_call.1} parent=1 // loop_header_branch
      %18 = sbr.rel (%p16) target = $region8
    $region5: #{tpu_custom_call.1} parent=1 // loop_body
      %s20 = ssub.s32 %s15, 1
      %s21 = ssub.s32 %s15, 2
      %s28 = sadd.s32 1, %s23
      %p29 = scmp.ge.s32.totalorder %s28, 1
      %s30 = scalar_select %p29, 0, %s28
      %s31 = sadd.s32 1, %s22
      %s32 = scalar_select %p29, %s31, %s22
      %p33 = scmp.ge.s32.totalorder %s32, 2
      %s34 = scalar_select %p33, 0, %s32
      %s35 = ssub.s32 %s23, %s30
      %p36 = scmp.eq.s32.totalorder %s35, 0
      %s38 = sadd.s32 %s37, 1
      %s39 = scalar_select %p36, %s37, %s38
      %p42 = pneg %p36
      %p43 = scmp.eq.s32.totalorder %s15, 1
      %p44 = por %p42, %p43
      %p45 = scmp.ne.s32.totalorder %s37, %s40
      %p46 = scmp.eq.s32.totalorder %s15, 0
      %p47 = por %p45, %p46
      %p48 = scmp.ne.s32.totalorder %s37, %s40
      %p49 = scmp.eq.s32.totalorder %s20, 1
      %p50 = por %p48, %p49
      %p51 = scmp.ne.s32.totalorder %s40, %s41
      %p52 = scmp.eq.s32.totalorder %s20, 0
      %p53 = por %p51, %p52
      %p54 = scmp.ne.s32.totalorder %s40, %s41
      %p55 = scmp.eq.s32.totalorder %s21, 1
      %p56 = por %p54, %p55
      %p58 = scmp.ne.s32.totalorder %s41, %s57
      %p59 = scmp.eq.s32.totalorder %s21, 0
      %p60 = por %p58, %p59
      %s62 = sadd.s32 %s61, 1
      %p65 = scmp.eq.s32.totalorder %s15, 1
      %p66 = scmp.ne.s32.totalorder %s61, %s63
      %p67 = scmp.eq.s32.totalorder %s15, 0
      %p68 = por %p66, %p67
      %p69 = scmp.ne.s32.totalorder %s61, %s63
      %p70 = scmp.eq.s32.totalorder %s20, 1
      %p71 = por %p69, %p70
      %p72 = scmp.ne.s32.totalorder %s63, %s64
      %p73 = scmp.eq.s32.totalorder %s20, 0
      %p74 = por %p72, %p73
      %p75 = scmp.ne.s32.totalorder %s63, %s64
      %p76 = scmp.eq.s32.totalorder %s21, 1
      %p77 = por %p75, %p76
      %p79 = scmp.ne.s32.totalorder %s64, %s78
      %p80 = scmp.eq.s32.totalorder %s21, 0
      %p81 = por %p79, %p80
      %s83 = sadd.s32 %s82, 1
      %p86 = scmp.eq.s32.totalorder %s15, 1
      %p87 = scmp.ne.s32.totalorder %s82, %s84
      %p88 = scmp.eq.s32.totalorder %s15, 0
      %p89 = por %p87, %p88
      %p90 = scmp.ne.s32.totalorder %s82, %s84
      %p91 = scmp.eq.s32.totalorder %s20, 1
      %p92 = por %p90, %p91
      %p93 = scmp.ne.s32.totalorder %s84, %s85
      %p94 = scmp.eq.s32.totalorder %s20, 0
      %p95 = por %p93, %p94
      %p96 = scmp.ne.s32.totalorder %s84, %s85
      %p97 = scmp.eq.s32.totalorder %s21, 1
      %p98 = por %p96, %p97
      %p100 = scmp.ne.s32.totalorder %s85, %s99
      %p101 = scmp.eq.s32.totalorder %s21, 0
      %p102 = por %p100, %p101
      %s104 = sadd.s32 %s103, 1
      %p107 = scmp.eq.s32.totalorder %s15, 1
      %p108 = scmp.ne.s32.totalorder %s103, %s105
      %p109 = scmp.eq.s32.totalorder %s15, 0
      %p110 = por %p108, %p109
      %p111 = scmp.ne.s32.totalorder %s103, %s105
      %p112 = scmp.eq.s32.totalorder %s20, 1
      %p113 = por %p111, %p112
      %p114 = scmp.ne.s32.totalorder %s105, %s106
      %p115 = scmp.eq.s32.totalorder %s20, 0
      %p116 = por %p114, %p115
      %p117 = scmp.ne.s32.totalorder %s105, %s106
      %p118 = scmp.eq.s32.totalorder %s21, 1
      %p119 = por %p117, %p118
      %p121 = scmp.ne.s32.totalorder %s106, %s120
      %p122 = scmp.eq.s32.totalorder %s21, 0
      %p123 = por %p121, %p122
      %s125 = sadd.s32 %s124, 1
      %p128 = scmp.eq.s32.totalorder %s15, 1
      %p129 = scmp.ne.s32.totalorder %s124, %s126
      %p130 = scmp.eq.s32.totalorder %s15, 0
      %p131 = por %p129, %p130
      %p132 = scmp.ne.s32.totalorder %s124, %s126
      %p133 = scmp.eq.s32.totalorder %s20, 1
      %p134 = por %p132, %p133
      %p135 = scmp.ne.s32.totalorder %s126, %s127
      %p136 = scmp.eq.s32.totalorder %s20, 0
      %p137 = por %p135, %p136
      %p138 = scmp.ne.s32.totalorder %s126, %s127
      %p139 = scmp.eq.s32.totalorder %s21, 1
      %p140 = por %p138, %p139
      %p142 = scmp.ne.s32.totalorder %s127, %s141
      %p143 = scmp.eq.s32.totalorder %s21, 0
      %p144 = por %p142, %p143
      %s145 = smul.u32 %s22, %s23
      %s146 = smul.u32 %s34, %s30
      %s147 = ssub.s32 %s145, %s146
      %p148 = scmp.eq.s32.totalorder %s147, 0
      %s150 = sadd.s32 %s149, 1
      %s151 = scalar_select %p148, %s149, %s150
      %p154 = pneg %p148
      %p155 = scmp.eq.s32.totalorder %s15, 1
      %p156 = por %p154, %p155
      %p157 = scmp.ne.s32.totalorder %s149, %s152
      %p158 = scmp.eq.s32.totalorder %s15, 0
      %p159 = por %p157, %p158
      %p160 = scmp.ne.s32.totalorder %s149, %s152
      %p161 = scmp.eq.s32.totalorder %s20, 1
      %p162 = por %p160, %p161
      %p163 = scmp.ne.s32.totalorder %s152, %s153
      %p164 = scmp.eq.s32.totalorder %s20, 0
      %p165 = por %p163, %p164
      %p166 = scmp.ne.s32.totalorder %s152, %s153
      %p167 = scmp.eq.s32.totalorder %s21, 1
      %p168 = por %p166, %p167
      %p170 = scmp.ne.s32.totalorder %s153, %s169
      %p171 = scmp.eq.s32.totalorder %s21, 0
      %p172 = por %p170, %p171
      %s173 = smul.u32 %s22, %s23
      %s174 = smul.u32 %s34, %s30
      %s175 = ssub.s32 %s173, %s174
      %p176 = scmp.eq.s32.totalorder %s175, 0
      %s178 = sadd.s32 %s177, 1
      %s179 = scalar_select %p176, %s177, %s178
      %p182 = pneg %p176
      %p183 = scmp.eq.s32.totalorder %s15, 1
      %p184 = por %p182, %p183
      %p185 = scmp.ne.s32.totalorder %s177, %s180
      %p186 = scmp.eq.s32.totalorder %s15, 0
      %p187 = por %p185, %p186
      %p188 = scmp.ne.s32.totalorder %s177, %s180
      %p189 = scmp.eq.s32.totalorder %s20, 1
      %p190 = por %p188, %p189
      %p191 = scmp.ne.s32.totalorder %s180, %s181
      %p192 = scmp.eq.s32.totalorder %s20, 0
      %p193 = por %p191, %p192
      %p194 = scmp.ne.s32.totalorder %s180, %s181
      %p195 = scmp.eq.s32.totalorder %s21, 1
      %p196 = por %p194, %p195
      %p198 = scmp.ne.s32.totalorder %s181, %s197
      %p199 = scmp.eq.s32.totalorder %s21, 0
      %p200 = por %p198, %p199
      %p201 = scmp.le.s32.totalorder 1, %s15
      %p202 = scmp.lt.s32.totalorder %s15, 3
      %p203 = pnand %p201, %p202
      %p204 = pneg %p203
      // Predicated region
      $region9: #{tpu_custom_call.1} parent=5 // pred_check
        _
      $region10: #{tpu_custom_call.1} parent=5 // pred_check_branch
        %206 = sbr.rel (%p203) target = $region12
      $region11: #{tpu_custom_call.1} parent=5 // pred_region
        %s207 = ssub.s32 %s15, 1
        // Predicated region
        $region13: #{tpu_custom_call.1} parent=11 // pred_check
          %p208 = pneg %p53
        $region14: #{tpu_custom_call.1} parent=11 // pred_check_branch
          %210 = sbr.rel (%p208) target = $region16
        $region15: #{tpu_custom_call.1} parent=11 // pred_region
          %p211 = scmp.lt.s32.totalorder %s25, 0
          %s212 = scalar_select %p211, %s25, 0
          %s213 = smul.addr %s212, 8
          %s214 = scalar_lea.vmem %s0, %s213
        $region16: #{tpu_custom_call.1} parent=11 // pred_fallthru
          _
        // Predicated region
        $region17: #{tpu_custom_call.1} parent=11 // pred_check
          %p215 = pneg %p74
        $region18: #{tpu_custom_call.1} parent=11 // pred_check_branch
          %217 = sbr.rel (%p215) target = $region20
        $region19: #{tpu_custom_call.1} parent=11 // pred_region
          _
        $region20: #{tpu_custom_call.1} parent=11 // pred_fallthru
          _
        // Predicated region
        $region21: #{tpu_custom_call.1} parent=11 // pred_check
          %p218 = pneg %p95
        $region22: #{tpu_custom_call.1} parent=11 // pred_check_branch
          %220 = sbr.rel (%p218) target = $region24
        $region23: #{tpu_custom_call.1} parent=11 // pred_region
          _
        $region24: #{tpu_custom_call.1} parent=11 // pred_fallthru
          _
        // Predicated region
        $region25: #{tpu_custom_call.1} parent=11 // pred_check
          %p221 = pneg %p116
        $region26: #{tpu_custom_call.1} parent=11 // pred_check_branch
          %223 = sbr.rel (%p221) target = $region28
        $region27: #{tpu_custom_call.1} parent=11 // pred_region
          _
        $region28: #{tpu_custom_call.1} parent=11 // pred_fallthru
          _
        // Predicated region
        $region29: #{tpu_custom_call.1} parent=11 // pred_check
          %p224 = pneg %p137
        $region30: #{tpu_custom_call.1} parent=11 // pred_check_branch
          %226 = sbr.rel (%p224) target = $region32
        $region31: #{tpu_custom_call.1} parent=11 // pred_region
          _
        $region32: #{tpu_custom_call.1} parent=11 // pred_fallthru
          _
      $region12: #{tpu_custom_call.1} parent=5 // pred_fallthru
        _
      %p227 = scmp.lt.s32.totalorder %s15, 2
      // Predicated region
      $region33: #{tpu_custom_call.1} parent=5 // pred_check
        %p228 = pneg %p227
      $region34: #{tpu_custom_call.1} parent=5 // pred_check_branch
        %230 = sbr.rel (%p228) target = $region36
      $region35: #{tpu_custom_call.1} parent=5 // pred_region
        // Predicated region
        $region37: #{tpu_custom_call.1} parent=35 // pred_check
          %p231 = pneg %p159
        $region38: #{tpu_custom_call.1} parent=35 // pred_check_branch
          %233 = sbr.rel (%p231) target = $region40
        $region39: #{tpu_custom_call.1} parent=35 // pred_region
          %s234 = smul.u32 %s22, %s23
          %p235 = scmp.lt.s32.totalorder %s234, 0
          %s236 = scalar_select %p235, %s234, 0
          %s237 = smul.addr %s236, 8
          %s238 = scalar_lea.vmem %s5, %s237
          %s239 = smul.u32 %s22, %s23
        $region40: #{tpu_custom_call.1} parent=35 // pred_fallthru
          _
      $region36: #{tpu_custom_call.1} parent=5 // pred_fallthru
        _
      %p240 = scmp.le.s32.totalorder 1, %s15
      %p241 = scmp.lt.s32.totalorder %s15, 3
      %p242 = pnand %p240, %p241
      %p243 = pneg %p242
      // Predicated region
      $region41: #{tpu_custom_call.1} parent=5 // pred_check
        _
      $region42: #{tpu_custom_call.1} parent=5 // pred_check_branch
        %245 = sbr.rel (%p242) target = $region44
      $region43: #{tpu_custom_call.1} parent=5 // pred_region
        %s246 = ssub.s32 %s15, 1
        %p247 = scmp.lt.s32.totalorder %s25, 0
        %s248 = scalar_select %p247, %s25, 0
        %s249 = smul.addr %s248, 8
        %s250 = scalar_lea.vmem %s0, %s249
        %p251 = pneg %p53
        %p252 = pneg %p50
        %p253 = pneg %p74
        %p254 = pneg %p71
        %p255 = pneg %p95
        %p256 = pneg %p92
        %p257 = pneg %p116
        %p258 = pneg %p113
        %p259 = pneg %p137
        %p260 = pneg %p134
        %s261 = smul.u32 %s24, %s25
        %p262 = scmp.lt.s32.totalorder %s261, 0
        %s263 = scalar_select %p262, %s261, 0
        %s264 = smul.addr %s263, 8
        %s265 = scalar_lea.vmem %s5, %s264
        %p266 = pneg %p165
        %p267 = pneg %p162
        %p268 = pneg %p193
        %p269 = pneg %p190
        %s270 = sand.u32 %s180, 1
        %s271 = scalar_lea.sflag [#allocation5], %s270
        %s272 = sand.u32 %s180, 1
        %s273 = smul.addr %s272, 8
        %s274 = scalar_lea.vmem [#allocation4], %s273
        %p275 = scmp.lt.s32.totalorder %s25, 0
        %s276 = scalar_select %p275, %s25, 0
        %s277 = smul.addr %s276, 8
        %s278 = scalar_lea.vmem %s0, %s277
        %s279 = smul.u32 %s24, %s25
        %p280 = scmp.lt.s32.totalorder %s279, 0
        %s281 = scalar_select %p280, %s279, 0
        %s282 = smul.addr %s281, 8
        %s283 = scalar_lea.vmem %s5, %s282
        %s284 = smul.u32 %s24, %s25
        %s285 = smul.u32 %s24, %s25
        %v286 = vld [vmem:[%s278] sm:$0xff]
        %v287 = vld [vmem:[%s1] sm:$0xff]
        %v288 = vld [vmem:[%s1 + $0x8] sm:$0xff]
        %v289 = vld [vmem:[%s1 + $0x10] sm:$0xff]
        %v290 = vld [vmem:[%s1 + $0x18] sm:$0xff]
        %v291 = vld [vmem:[%s2] sm:$0x1]
        %v293 = vlaneseq
        %v294 = vshrl.u32 %v293, 7
        %v295 = vsub.s32 0, %v294
        %v296 = vrot.slane %v291, %v295
        %vm298 = vcmask 261120
        %v300 = vsel %vm298, %v286, 0
        %302 = vmatprep.subr.mxu0 0.0
        %303 = vmatpush1.msra.mxu0 %v287
        %304 = vmatprep.subr.mxu0 0.0
        %305 = vmatpush1.msra.mxu0 %v288
        %306 = vmatprep.subr.mxu0 0.0
        %307 = vmatpush1.msra.mxu0 %v289
        %308 = vmatprep.subr.mxu0 0.0
        %309 = vmatpush1.msra.mxu0 %v290
        %310 = vmatprep.subr.mxu0 0.0
        %311 = vmatpush1.msra.mxu0 0.0
        %312 = vmatprep.subr.mxu0 0.0
        %313 = vmatpush1.msra.mxu0 0.0
        %314 = vmatprep.subr.mxu0 0.0
        %315 = vmatpush1.msra.mxu0 0.0
        %316 = vmatprep.subr.mxu0 0.0
        %317 = vmatpush1.msra.mxu0 0.0
        %318 = vmatprep.subr.mxu0 0.0
        %319 = vmatpush1.msra.mxu0 0.0
        %320 = vmatprep.subr.mxu0 0.0
        %321 = vmatpush1.msra.mxu0 0.0
        %322 = vmatprep.subr.mxu0 0.0
        %323 = vmatpush1.msra.mxu0 0.0
        %324 = vmatprep.subr.mxu0 0.0
        %325 = vmatpush1.msra.mxu0 0.0
        %326 = vmatprep.subr.mxu0 0.0
        %327 = vmatpush1.msra.mxu0 0.0
        %328 = vmatprep.subr.mxu0 0.0
        %329 = vmatpush1.msra.mxu0 0.0
        %330 = vmatprep.subr.mxu0 0.0
        %331 = vmatpush1.msra.mxu0 0.0
        %332 = vmatprep.subr.mxu0 0.0
        %333 = vmatpush1.msra.mxu0 0.0
        %334 = vmatprep.subr.mxu0 0.0
        %335 = vmatpush1.msra.mxu0 0.0
        %336 = vmatprep.subr.mxu0 0.0
        %337 = vmatpush1.msra.mxu0 0.0
        %338 = vmatprep.subr.mxu0 0.0
        %339 = vmatpush1.msra.mxu0 0.0
        %340 = vmatprep.subr.mxu0 0.0
        %341 = vmatpush1.msra.mxu0 0.0
        %342 = vmatprep.subr.mxu0 0.0
        %343 = vmatpush1.msra.mxu0 0.0
        %344 = vmatprep.subr.mxu0 0.0
        %345 = vmatpush1.msra.mxu0 0.0
        %346 = vmatprep.subr.mxu0 0.0
        %347 = vmatpush1.msra.mxu0 0.0
        %348 = vmatprep.subr.mxu0 0.0
        %349 = vmatpush1.msra.mxu0 0.0
        %350 = vmatprep.subr.mxu0 0.0
        %351 = vmatpush1.msra.mxu0 0.0
        %352 = vmatprep.subr.mxu0 0.0
        %353 = vmatpush1.msra.mxu0 0.0
        %354 = vmatprep.subr.mxu0 0.0
        %355 = vmatpush1.msra.mxu0 0.0
        %356 = vmatprep.subr.mxu0 0.0
        %357 = vmatpush1.msra.mxu0 0.0
        %358 = vmatprep.subr.mxu0 0.0
        %359 = vmatpush1.msra.mxu0 0.0
        %360 = vmatprep.subr.mxu0 0.0
        %361 = vmatpush1.msra.mxu0 0.0
        %362 = vmatprep.subr.mxu0 0.0
        %363 = vmatpush1.msra.mxu0 0.0
        %364 = vmatprep.subr.mxu0 0.0
        %365 = vmatpush1.msra.mxu0 0.0
        %366 = vmatprep.mubr.f32.mxu0 0.0
        %367 = vmatmul.mubr.f32.gmra.mrb[0].mxu0 %v300
        %v368 = vpop.f32.mrb[0].mxu0
        %v369 = vadd.f32 %v296, %v368
        %v370 = vpop.f32.mrb[0].mxu0
        %371 = vdwg.mxu0
        %p372 = scmp.eq.s32.totalorder %s24, 0
        %p373 = scmp.eq.s32.totalorder %s25, 0
        %p374 = pnand %p372, %p373
        %p375 = pneg %p374
        // Predicated region
        $region45: #{tpu_custom_call.1} parent=43 // pred_check
          _
        $region46: #{tpu_custom_call.1} parent=43 // pred_check_branch
          %377 = sbr.rel (%p374) target = $region48
        $region47: #{tpu_custom_call.1} parent=43 // pred_region
          %vm378 = vcmask 122880
          %379 = vst.msk [vmem:[#allocation2] sm:$0x1] %vm378, 0.0
          %380 = vst.msk [vmem:[#allocation3] sm:$0x1] %vm378, 0.0
        $region48: #{tpu_custom_call.1} parent=43 // pred_fallthru
          _
        // Predicated region
        $region49: #{tpu_custom_call.1} parent=43 // pred_check
          %p381 = pneg %p372
        $region50: #{tpu_custom_call.1} parent=43 // pred_check_branch
          %383 = sbr.rel (%p381) target = $region52
        $region51: #{tpu_custom_call.1} parent=43 // pred_region
          %v384 = vld [vmem:[#allocation2] sm:$0x1]
          %vm385 = vcmask 130048
          %v386 = vsel %vm385, %v369, 0.0
          %v387 = vrot.slane %v386, 4
          %v388 = vadd.f32 %v386, %v387
          %v389 = vrot.slane %v388, 2
          %v390 = vadd.f32 %v388, %v389
          %v391 = vrot.slane %v390, 1
          %v392 = vadd.f32 %v390, %v391
          %v393 = vadd.f32 %v384, %v392
          %vm394 = vcmask 122880
          %395 = vst.msk [vmem:[#allocation2] sm:$0x1] %vm394, %v393
          %v396 = vld [vmem:[#allocation3] sm:$0x1]
          %v397 = vmul.f32 %v369, %v369
          %v398 = vsel %vm385, %v397, 0.0
          %v399 = vrot.slane %v398, 4
          %v400 = vadd.f32 %v398, %v399
          %v401 = vrot.slane %v400, 2
          %v402 = vadd.f32 %v400, %v401
          %v403 = vrot.slane %v402, 1
          %v404 = vadd.f32 %v402, %v403
          %v405 = vadd.f32 %v396, %v404
          %406 = vst.msk [vmem:[#allocation3] sm:$0x1] %vm394, %v405
        $region52: #{tpu_custom_call.1} parent=43 // pred_fallthru
          _
        %p407 = scmp.eq.s32.totalorder %s24, 1
        // Predicated region
        $region53: #{tpu_custom_call.1} parent=43 // pred_check
          %p408 = pneg %p407
        $region54: #{tpu_custom_call.1} parent=43 // pred_check_branch
          %410 = sbr.rel (%p408) target = $region56
        $region55: #{tpu_custom_call.1} parent=43 // pred_region
          %v411 = vld [vmem:[#allocation2] sm:$0x1]
          %v412 = vmul.f32 %v411, 0.125
          %v413 = vld [vmem:[#allocation3] sm:$0x1]
          %v414 = vmul.f32 %v413, 0.125
          %v415 = vmul.f32 %v412, %v412
          %v416 = vsub.f32 %v414, %v415
          %v417 = vld [vmem:[%s3] sm:$0x1]
          %v418 = vadd.f32 %v416, 1e-05
          %v419 = vrsqrt.pop %v418
          %v420 = vmul.f32 %v417, %v419
          %v421 = vld [vmem:[%s4] sm:$0x1]
          %v422 = vmul.f32 %v412, %v420
          %v423 = vsub.f32 %v421, %v422
          %v425 = vlaneseq
          %v426 = vshrl.u32 %v425, 7
          %v427 = vsub.s32 0, %v426
          %v428 = vrot.slane %v420, %v427
          %v430 = vmul.f32 %v369, %v428
          %v432 = vlaneseq
          %v433 = vshrl.u32 %v432, 7
          %v434 = vsub.s32 0, %v433
          %v435 = vrot.slane %v423, %v434
          %v437 = vadd.f32 %v430, %v435
          %v438 = vmax.f32 %v437, 0.0
          %v439 = vld [vmem:[%s283] sm:$0xff]
          %v440 = vmul.f32 %v438, %v439
          %vm441 = vcmask 130048
          %442 = vst.msk [vmem:[%s274] sm:$0xff] %vm441, %v440
        $region56: #{tpu_custom_call.1} parent=43 // pred_fallthru
          _
        %s443 = sand.u32 %s180, 1
        %s444 = scalar_lea.sflag [#allocation5], %s443
        %s445 = sand.u32 %s180, 1
        %s446 = smul.addr %s445, 8
        %s447 = scalar_lea.vmem [#allocation4], %s446
        // Predicated region
        $region57: #{tpu_custom_call.1} parent=43 // pred_check
          %p448 = pneg %p190
        $region58: #{tpu_custom_call.1} parent=43 // pred_check_branch
          %450 = sbr.rel (%p448) target = $region60
        $region59: #{tpu_custom_call.1} parent=43 // pred_region
          %s451 = smul.u32 %s24, %s25
          %s453 = ssub.s32 128, 128
          %454 = vsyncadd %s444, %s453
          %s455 = smul.addr %s451, 128
          %s456 = scalar_lea.hbm %s6, %s455
          %s458 = sshll.u32 %s447, 4
          %s459 = int_to_ptr.vmem [resolvable:$true] %s458
          %461 = dma.vmem_to_hbm [thread:$0]  %s459, 128, %s456, %s444
        $region60: #{tpu_custom_call.1} parent=43 // pred_fallthru
          _
      $region44: #{tpu_custom_call.1} parent=5 // pred_fallthru
        _
      %p462 = scmp.le.s32.totalorder 2, %s15
      // Predicated region
      $region61: #{tpu_custom_call.1} parent=5 // pred_check
        %p463 = pneg %p462
      $region62: #{tpu_custom_call.1} parent=5 // pred_check_branch
        %465 = sbr.rel (%p463) target = $region64
      $region63: #{tpu_custom_call.1} parent=5 // pred_region
        %s466 = ssub.s32 %s15, 2
        // Predicated region
        $region65: #{tpu_custom_call.1} parent=63 // pred_check
          %p467 = pneg %p196
        $region66: #{tpu_custom_call.1} parent=63 // pred_check_branch
          %469 = sbr.rel (%p467) target = $region68
        $region67: #{tpu_custom_call.1} parent=63 // pred_region
          %s470 = sand.u32 %s181, 1
          %s471 = scalar_lea.sflag [#allocation5], %s470
          %s472 = sand.u32 %s181, 1
          %s473 = smul.addr %s472, 8
          %s474 = scalar_lea.vmem [#allocation4], %s473
          %475 = dma.done %s471, 128
        $region68: #{tpu_custom_call.1} parent=63 // pred_fallthru
          _
      $region64: #{tpu_custom_call.1} parent=5 // pred_fallthru
        _
    $region6: #{tpu_custom_call.1} parent=1 // loop_footer
      %s19 = sadd.s32 1, %s15
    $region7: #{tpu_custom_call.1} parent=1 // loop_footer_branch
      %14 = sbr.rel target = $region3
    $region8: #{tpu_custom_call.1} parent=1 // loop_exit
      _
    %476 = vsyncpa [#allocation5], 1
    %s477 = scalar_lea.sflag [#allocation5], 1
    %478 = vsyncpa %s477, 1

</llo_original>
